<compile_context>
chip_gen: v7x
topology: tpu7x:2x2x1
jax: 0.10.0
libtpu: 0.0.40
codegen_flags: <defaults>
</compile_context>

<pallas_src>
import jax
import jax.numpy as jnp
from jax.experimental import pallas as pl
from jax.experimental.pallas import tpu as pltpu

_EPS = 1e-5  # nn.InstanceNorm1d default


def _make_ke_kernel(num_layers: int, n_valid: int, n_pad: int, use_bf16_matmul: bool):
    """Kernel closure for a fixed number of conv1d(k=1) layers."""
    needs_mask = n_pad != n_valid
    inv_n = 1.0 / float(n_valid)

    def kernel(kpts_ref, *refs):
        # refs = (w0, b0, w1, b1, ..., out)
        out_ref = refs[-1]
        wb = refs[:-1]

        x = kpts_ref[...].astype(jnp.float32)            # (Bb, Np, 2)
        Bb = x.shape[0]

        if needs_mask:
            row = jax.lax.broadcasted_iota(jnp.int32, (n_pad, 1), 0)
            mask = (row < n_valid).astype(jnp.float32)   # (Np, 1), static
        else:
            mask = None

        def instance_norm_relu(h):
            # InstanceNorm1d(affine=False): normalize over the (valid) N rows per
            # (batch, channel), biased variance.  Single pass: masked sum + sumsq.
            hm = h if mask is None else h * mask
            s = jnp.sum(hm, axis=1, keepdims=True)       # (Bb, 1, C)
            ss = jnp.sum(hm * hm, axis=1, keepdims=True) # (Bb, 1, C)
            mean = s * inv_n
            var = jnp.maximum(ss * inv_n - mean * mean, 0.0)   # guard cancellation
            h = (h - mean) * jax.lax.rsqrt(var + _EPS)
            return jnp.maximum(h, 0.0)                   # ReLU

        # ---- layer 0: Conv1d(2 -> C1).  K=2 matmul wastes the MXU; two VPU FMAs.
        w0 = wb[0][...].astype(jnp.float32)              # (2, C1), f32
        b0 = wb[1][...]                                  # (1, C1), f32
        h = (x[:, :, 0:1] * w0[0:1, :]
             + x[:, :, 1:2] * w0[1:2, :]
             + b0)                                       # (Bb, Np, C1)
        if num_layers > 1:
            h = instance_norm_relu(h)

        # ---- layers 1 .. L-1: one tall (Bb*Np, C_in) x (C_in, C_out) MXU matmul.
        # Weights arrive pre-cast (bf16 on the fast path); f32 accumulation.
        for i in range(1, num_layers):
            w = wb[2 * i][...]                           # (C_in, C_out)
            b = wb[2 * i + 1][...]                       # (1, C_out), f32
            c_in, c_out = w.shape
            lhs = h.reshape(Bb * n_pad, c_in)
            if use_bf16_matmul:
                lhs = lhs.astype(jnp.bfloat16)
            h = (jnp.dot(lhs, w, preferred_element_type=jnp.float32)
                 + b).reshape(Bb, n_pad, c_out)
            if i < num_layers - 1:
                h = instance_norm_relu(h)

        # ---- fused NCW transpose: one full-block store, cast before the XLU move.
        out_ref[...] = jnp.transpose(h.astype(out_ref.dtype), (0, 2, 1))

    return kernel


def _vmem_budget_bytes():
    """Generation-aware VMEM budget with headroom for Mosaic internal scratch."""
    cap = None
    try:
        cap = getattr(pltpu.get_tpu_info(), "vmem_capacity_bytes", None)
    except Exception:
        cap = None
    if not cap:
        cap = 64 * 1024 * 1024          # conservative: v7x physical VMEM
    # ~40 MiB on 64 MiB parts (v7x), ~80 MiB on 128 MiB parts (v5e/v6e).
    return min(int(cap * 0.625), 96 * 1024 * 1024)


def _target_min_grid_steps():
    """How many grid steps we want so every TensorCore gets pipelined work."""
    try:
        kind = jax.devices()[0].device_kind.lower()
    except Exception:
        return 2
    if "v7" in kind:
        return 4            # 2 TensorCores -> >= 2 steps per core (DMA/compute overlap)
    if "lite" in kind or "v5e" in kind or "v6" in kind:
        return 1            # single TC: one tall matmul per layer, no step overhead
    return 2                # v4 / v5p megacore: >= 1 step per core


def _pick_block_batch(B, n_pad, channels, feature_dim, out_itemsize,
                      vmem_budget, target_min_steps):
    """Largest Bb (divisor of B) whose working set fits the VMEM budget, keeping
    at least `target_min_steps` grid steps (when B allows) for multi-core parts."""
    max_c = max(channels[1:])
    lane = 128
    per_b = n_pad * (
        2 * 4 * lane                       # double-buffered f32 input tile (lane-padded (·,Np,2))
        + 2 * out_itemsize * feature_dim   # double-buffered output tile
        + 4 * 4 * max_c                    # a few f32 intermediates of the widest layer
        + 2 * max_c                        # bf16 matmul LHS copy
        + out_itemsize * feature_dim       # output-transpose temporary
    )
    # bf16 weights + f32 biases, double-buffered (grid-invariant index_map, but budget 2x).
    weight_bytes = 2 * sum(2 * ci * co + 4 * co
                           for ci, co in zip(channels[:-1], channels[1:]))
    cap = max(1, (vmem_budget - weight_bytes) // per_b)
    if target_min_steps > 1:
        desired = min(target_min_steps, B)
        cap = min(cap, max(1, B // desired))
    bb = 1
    for d in range(1, B + 1):
        if B % d == 0 and d <= cap:
            bb = d
    return bb


def keypoint_encoder_forward(kpts, weights, biases, *, use_bf16_matmul=True):
    """kpts: [B, N, 2].  weights[i]: [C_in_i, C_out_i], biases[i]: [1, C_out_i].

    Returns [B, feature_dim, N] (PyTorch NCW output of the module)."""
    B, N, C0 = kpts.shape
    num_layers = len(weights)
    feature_dim = weights[-1].shape[1]
    channels = [C0] + [w.shape[1] for w in weights]

    # Lane-dense output & tile-aligned matmul M dim: pad N to a multiple of 128.
    n_pad = max(128, ((N + 127) // 128) * 128)
    kpts_p = kpts if n_pad == N else jnp.pad(kpts, ((0, 0), (0, n_pad - N), (0, 0)))

    vmem_budget = _vmem_budget_bytes()
    out_itemsize = jnp.dtype(kpts.dtype).itemsize
    Bb = _pick_block_batch(B, n_pad, channels, feature_dim, out_itemsize,
                           vmem_budget, _target_min_grid_steps())
    num_blocks = B // Bb

    # Pre-cast MXU-layer weights to bf16 in the wrapper (no per-step in-kernel cast);
    # layer 0 weight stays f32 (VPU path), biases stay f32 (added post-accumulation).
    params = []
    in_specs = [pl.BlockSpec((Bb, n_pad, C0), lambda b: (b, 0, 0))]
    for i, (w, bias) in enumerate(zip(weights, biases)):
        wk = w.astype(jnp.bfloat16) if (use_bf16_matmul and i > 0) else w.astype(jnp.float32)
        bk = bias.astype(jnp.float32)
        in_specs.append(pl.BlockSpec(wk.shape, lambda b: (0, 0)))
        in_specs.append(pl.BlockSpec(bk.shape, lambda b: (0, 0)))
        params.extend([wk, bk])

    # NCW output written directly by the kernel (transpose fused; padded, lane-dense).
    out_specs = pl.BlockSpec((Bb, feature_dim, n_pad), lambda b: (b, 0, 0))

    flops = 2 * B * n_pad * sum(ci * co for ci, co in zip(channels[:-1], channels[1:]))
    bytes_accessed = (kpts_p.size * kpts_p.dtype.itemsize
                      + B * feature_dim * n_pad * out_itemsize
                      + sum(int(p.size) * p.dtype.itemsize for p in params))
    transcendentals = B * sum(channels[1:-1])   # one rsqrt per (batch, channel) per norm

    out = pl.pallas_call(
        _make_ke_kernel(num_layers, N, n_pad, use_bf16_matmul),
        out_shape=jax.ShapeDtypeStruct((B, feature_dim, n_pad), kpts.dtype),
        grid_spec=pl.GridSpec(
            grid=(num_blocks,),
            in_specs=in_specs,
            out_specs=out_specs,
        ),
        compiler_params=pltpu.CompilerParams(
            dimension_semantics=("parallel",),
            vmem_limit_bytes=int(vmem_budget),
        ),
        cost_estimate=pl.CostEstimate(
            flops=flops,
            transcendentals=transcendentals,
            bytes_accessed=bytes_accessed,
        ),
    )(kpts_p, *params)

    return out if n_pad == N else out[:, :, :N]


def _reference_forward(kpts, weights, biases, use_bf16_matmul=True):
    """Pure-JAX reference mirroring the PyTorch module (channels-last internally),
    with the same bf16-input / f32-accumulate matmul semantics as the kernel."""
    h = kpts.astype(jnp.float32)  # [B, N, 2]
    L = len(weights)
    for i in range(L):
        w = weights[i].astype(jnp.float32)
        if i == 0:
            # Matches the kernel's exact-f32 VPU path for the K=2 layer.
            h = h[..., 0:1] * w[0:1, :] + h[..., 1:2] * w[1:2, :] + biases[i][None]
        else:
            lhs = h
            if use_bf16_matmul:
                lhs = lhs.astype(jnp.bfloat16)
                w = w.astype(jnp.bfloat16)
            h = jnp.einsum("bnc,cd->bnd", lhs, w,
                           preferred_element_type=jnp.float32) + biases[i][None]
        if i < L - 1:
            mean = jnp.mean(h, axis=1, keepdims=True)
            var = jnp.mean((h - mean) ** 2, axis=1, keepdims=True)
            h = (h - mean) * jax.lax.rsqrt(var + _EPS)
            h = jnp.maximum(h, 0.0)
    return jnp.transpose(h, (0, 2, 1))  # [B, feature_dim, N]


def _init_params(key, channels):
    """Deterministic synthetic parameters.  channels = [2] + layers + [feature_dim]."""
    weights, biases = [], []
    n = len(channels)
    for i in range(1, n):
        c_in, c_out = channels[i - 1], channels[i]
        key, kw, kb = jax.random.split(key, 3)
        w = jax.random.normal(kw, (c_in, c_out), jnp.float32) * 0.1
        if i == n - 1:
            b = jnp.zeros((1, c_out), jnp.float32)  # nn.init.constant_(last.bias, 0.0)
        else:
            b = jax.random.normal(kb, (1, c_out), jnp.float32) * 0.01
        weights.append(w)
        biases.append(b)
    return weights, biases


if __name__ == "__main__":
    key = jax.random.PRNGKey(0)

    B, N = 2, 16
    layers = [32, 32]
    feature_dim = 32
    channels = [2] + layers + [feature_dim]

    key, kkpts = jax.random.split(key)
    kpts = jax.random.uniform(kkpts, (B, N, 2), jnp.float32)  # [B, N, 2] like PyTorch input

    weights, biases = _init_params(key, channels)

    out = keypoint_encoder_forward(kpts, weights, biases)
    out = jax.block_until_ready(out)

    ref = _reference_forward(kpts, weights, biases)
    assert out.shape == (B, feature_dim, N), out.shape
    assert jnp.allclose(out, ref, atol=2e-3, rtol=2e-3), "mismatch vs reference"

    print("KERNEL_OK")
</pallas_src>

<mosaic_0001>
module attributes {stable_mosaic.version = 11 : i64} {
  func.func @kernel(%arg0: i32, %arg1: memref<1x128x2xf32, #tpu.memory_space<vmem>>, %arg2: memref<2x32xf32, #tpu.memory_space<vmem>>, %arg3: memref<1x32xf32, #tpu.memory_space<vmem>>, %arg4: memref<32x32xbf16, #tpu.memory_space<vmem>>, %arg5: memref<1x32xf32, #tpu.memory_space<vmem>>, %arg6: memref<32x32xbf16, #tpu.memory_space<vmem>>, %arg7: memref<1x32xf32, #tpu.memory_space<vmem>>, %arg8: memref<1x32x128xf32, #tpu.memory_space<vmem>>) attributes {dimension_semantics = [#tpu.dimension_semantics<parallel>], iteration_bounds = array<i64: 2>, scalar_prefetch = 0 : i64, scratch_operands = 0 : i64, tpu.core_type = #tpu.core_type<tc>, window_params = [{transform_indices = @transform_0, window_bounds = array<i64: 1, 128, 2>}, {pipeline_mode = #tpu.pipeline_mode<synchronous>, transform_indices = @transform_1, window_bounds = array<i64: 2, 32>}, {pipeline_mode = #tpu.pipeline_mode<synchronous>, transform_indices = @transform_2, window_bounds = array<i64: 1, 32>}, {pipeline_mode = #tpu.pipeline_mode<synchronous>, transform_indices = @transform_3, window_bounds = array<i64: 32, 32>}, {pipeline_mode = #tpu.pipeline_mode<synchronous>, transform_indices = @transform_4, window_bounds = array<i64: 1, 32>}, {pipeline_mode = #tpu.pipeline_mode<synchronous>, transform_indices = @transform_5, window_bounds = array<i64: 32, 32>}, {pipeline_mode = #tpu.pipeline_mode<synchronous>, transform_indices = @transform_6, window_bounds = array<i64: 1, 32>}, {transform_indices = @transform_7, window_bounds = array<i64: 1, 32, 128>}]} {
    %c0 = arith.constant 0 : index
    %c0_0 = arith.constant 0 : index
    %c0_1 = arith.constant 0 : index
    %0 = vector.load %arg1[%c0, %c0_0, %c0_1] : memref<1x128x2xf32, #tpu.memory_space<vmem>>, vector<1x128x2xf32>
    %1 = tpu.iota {dimensions = array<i32: 0>} : vector<128x1xi32>
    %c16_i32 = arith.constant 16 : i32
    %2 = vector.broadcast %c16_i32 : i32 to vector<128x1xi32>
    %3 = arith.cmpi slt, %1, %2 : vector<128x1xi32>
    %4 = arith.extui %3 : vector<128x1xi1> to vector<128x1xi32>
    %5 = arith.sitofp %4 : vector<128x1xi32> to vector<128x1xf32>
    %c0_2 = arith.constant 0 : index
    %c0_3 = arith.constant 0 : index
    %6 = vector.load %arg2[%c0_2, %c0_3] : memref<2x32xf32, #tpu.memory_space<vmem>>, vector<2x32xf32>
    %c0_4 = arith.constant 0 : index
    %c0_5 = arith.constant 0 : index
    %7 = vector.load %arg3[%c0_4, %c0_5] : memref<1x32xf32, #tpu.memory_space<vmem>>, vector<1x32xf32>
    %8 = vector.extract_strided_slice %0 {offsets = [0, 0, 0], sizes = [1, 128, 1], strides = [1, 1, 1]} : vector<1x128x2xf32> to vector<1x128x1xf32>
    %9 = vector.extract_strided_slice %6 {offsets = [0, 0], sizes = [1, 32], strides = [1, 1]} : vector<2x32xf32> to vector<1x32xf32>
    %10 = vector.shape_cast %9 : vector<1x32xf32> to vector<1x1x32xf32>
    %11 = vector.broadcast %8 : vector<1x128x1xf32> to vector<1x128x32xf32>
    %12 = vector.broadcast %10 : vector<1x1x32xf32> to vector<1x128x32xf32>
    %13 = arith.mulf %11, %12 : vector<1x128x32xf32>
    %14 = vector.extract_strided_slice %0 {offsets = [0, 0, 1], sizes = [1, 128, 1], strides = [1, 1, 1]} : vector<1x128x2xf32> to vector<1x128x1xf32>
    %15 = vector.extract_strided_slice %6 {offsets = [1, 0], sizes = [1, 32], strides = [1, 1]} : vector<2x32xf32> to vector<1x32xf32>
    %16 = vector.shape_cast %15 : vector<1x32xf32> to vector<1x1x32xf32>
    %17 = vector.broadcast %14 : vector<1x128x1xf32> to vector<1x128x32xf32>
    %18 = vector.broadcast %16 : vector<1x1x32xf32> to vector<1x128x32xf32>
    %19 = arith.mulf %17, %18 : vector<1x128x32xf32>
    %20 = arith.addf %13, %19 : vector<1x128x32xf32>
    %21 = vector.shape_cast %7 : vector<1x32xf32> to vector<1x1x32xf32>
    %22 = vector.broadcast %21 : vector<1x1x32xf32> to vector<1x128x32xf32>
    %23 = arith.addf %20, %22 : vector<1x128x32xf32>
    %24 = vector.shape_cast %5 : vector<128x1xf32> to vector<1x128x1xf32>
    %25 = vector.broadcast %24 : vector<1x128x1xf32> to vector<1x128x32xf32>
    %26 = arith.mulf %23, %25 : vector<1x128x32xf32>
    %cst = arith.constant dense<0.000000e+00> : vector<1x32xf32>
    %27 = vector.multi_reduction <add>, %26, %cst [1] : vector<1x128x32xf32> to vector<1x32xf32>
    %28 = vector.shape_cast %27 : vector<1x32xf32> to vector<1x1x32xf32>
    %29 = arith.mulf %26, %26 : vector<1x128x32xf32>
    %cst_6 = arith.constant dense<0.000000e+00> : vector<1x32xf32>
    %30 = vector.multi_reduction <add>, %29, %cst_6 [1] : vector<1x128x32xf32> to vector<1x32xf32>
    %31 = vector.shape_cast %30 : vector<1x32xf32> to vector<1x1x32xf32>
    %cst_7 = arith.constant 6.250000e-02 : f32
    %32 = vector.broadcast %cst_7 : f32 to vector<1x1x32xf32>
    %33 = arith.mulf %28, %32 : vector<1x1x32xf32>
    %cst_8 = arith.constant 6.250000e-02 : f32
    %34 = vector.broadcast %cst_8 : f32 to vector<1x1x32xf32>
    %35 = arith.mulf %31, %34 : vector<1x1x32xf32>
    %36 = arith.mulf %33, %33 : vector<1x1x32xf32>
    %37 = arith.subf %35, %36 : vector<1x1x32xf32>
    %cst_9 = arith.constant 0.000000e+00 : f32
    %38 = vector.broadcast %cst_9 : f32 to vector<1x1x32xf32>
    %39 = arith.maximumf %37, %38 : vector<1x1x32xf32>
    %40 = vector.broadcast %33 : vector<1x1x32xf32> to vector<1x128x32xf32>
    %41 = arith.subf %23, %40 : vector<1x128x32xf32>
    %cst_10 = arith.constant 9.99999974E-6 : f32
    %42 = vector.broadcast %cst_10 : f32 to vector<1x1x32xf32>
    %43 = arith.addf %39, %42 : vector<1x1x32xf32>
    %44 = math.rsqrt %43 : vector<1x1x32xf32>
    %45 = vector.broadcast %44 : vector<1x1x32xf32> to vector<1x128x32xf32>
    %46 = arith.mulf %41, %45 : vector<1x128x32xf32>
    %cst_11 = arith.constant 0.000000e+00 : f32
    %47 = vector.broadcast %cst_11 : f32 to vector<1x128x32xf32>
    %48 = arith.maximumf %46, %47 : vector<1x128x32xf32>
    %c0_12 = arith.constant 0 : index
    %c0_13 = arith.constant 0 : index
    %49 = vector.load %arg4[%c0_12, %c0_13] : memref<32x32xbf16, #tpu.memory_space<vmem>>, vector<32x32xbf16>
    %c0_14 = arith.constant 0 : index
    %c0_15 = arith.constant 0 : index
    %50 = vector.load %arg5[%c0_14, %c0_15] : memref<1x32xf32, #tpu.memory_space<vmem>>, vector<1x32xf32>
    %51 = vector.shape_cast %48 : vector<1x128x32xf32> to vector<128x32xf32>
    %52 = arith.truncf %51 : vector<128x32xf32> to vector<128x32xbf16>
    %cst_16 = arith.constant dense<0.000000e+00> : vector<128x32xf32>
    %53 = tpu.matmul %52, %49, %cst_16 {dimension_numbers = #tpu.dot_dimension_numbers<[1], [0], [0], [1], [0, 0, 1, 1], [], []>} : vector<128x32xbf16>, vector<32x32xbf16>, vector<128x32xf32> -> vector<128x32xf32>
    %54 = vector.broadcast %50 : vector<1x32xf32> to vector<128x32xf32>
    %55 = arith.addf %53, %54 : vector<128x32xf32>
    %56 = vector.shape_cast %55 : vector<128x32xf32> to vector<1x128x32xf32>
    %57 = vector.shape_cast %5 : vector<128x1xf32> to vector<1x128x1xf32>
    %58 = vector.broadcast %57 : vector<1x128x1xf32> to vector<1x128x32xf32>
    %59 = arith.mulf %56, %58 : vector<1x128x32xf32>
    %cst_17 = arith.constant dense<0.000000e+00> : vector<1x32xf32>
    %60 = vector.multi_reduction <add>, %59, %cst_17 [1] : vector<1x128x32xf32> to vector<1x32xf32>
    %61 = vector.shape_cast %60 : vector<1x32xf32> to vector<1x1x32xf32>
    %62 = arith.mulf %59, %59 : vector<1x128x32xf32>
    %cst_18 = arith.constant dense<0.000000e+00> : vector<1x32xf32>
    %63 = vector.multi_reduction <add>, %62, %cst_18 [1] : vector<1x128x32xf32> to vector<1x32xf32>
    %64 = vector.shape_cast %63 : vector<1x32xf32> to vector<1x1x32xf32>
    %cst_19 = arith.constant 6.250000e-02 : f32
    %65 = vector.broadcast %cst_19 : f32 to vector<1x1x32xf32>
    %66 = arith.mulf %61, %65 : vector<1x1x32xf32>
    %cst_20 = arith.constant 6.250000e-02 : f32
    %67 = vector.broadcast %cst_20 : f32 to vector<1x1x32xf32>
    %68 = arith.mulf %64, %67 : vector<1x1x32xf32>
    %69 = arith.mulf %66, %66 : vector<1x1x32xf32>
    %70 = arith.subf %68, %69 : vector<1x1x32xf32>
    %cst_21 = arith.constant 0.000000e+00 : f32
    %71 = vector.broadcast %cst_21 : f32 to vector<1x1x32xf32>
    %72 = arith.maximumf %70, %71 : vector<1x1x32xf32>
    %73 = vector.broadcast %66 : vector<1x1x32xf32> to vector<1x128x32xf32>
    %74 = arith.subf %56, %73 : vector<1x128x32xf32>
    %cst_22 = arith.constant 9.99999974E-6 : f32
    %75 = vector.broadcast %cst_22 : f32 to vector<1x1x32xf32>
    %76 = arith.addf %72, %75 : vector<1x1x32xf32>
    %77 = math.rsqrt %76 : vector<1x1x32xf32>
    %78 = vector.broadcast %77 : vector<1x1x32xf32> to vector<1x128x32xf32>
    %79 = arith.mulf %74, %78 : vector<1x128x32xf32>
    %cst_23 = arith.constant 0.000000e+00 : f32
    %80 = vector.broadcast %cst_23 : f32 to vector<1x128x32xf32>
    %81 = arith.maximumf %79, %80 : vector<1x128x32xf32>
    %c0_24 = arith.constant 0 : index
    %c0_25 = arith.constant 0 : index
    %82 = vector.load %arg6[%c0_24, %c0_25] : memref<32x32xbf16, #tpu.memory_space<vmem>>, vector<32x32xbf16>
    %c0_26 = arith.constant 0 : index
    %c0_27 = arith.constant 0 : index
    %83 = vector.load %arg7[%c0_26, %c0_27] : memref<1x32xf32, #tpu.memory_space<vmem>>, vector<1x32xf32>
    %84 = vector.shape_cast %81 : vector<1x128x32xf32> to vector<128x32xf32>
    %85 = arith.truncf %84 : vector<128x32xf32> to vector<128x32xbf16>
    %cst_28 = arith.constant dense<0.000000e+00> : vector<128x32xf32>
    %86 = tpu.matmul %85, %82, %cst_28 {dimension_numbers = #tpu.dot_dimension_numbers<[1], [0], [0], [1], [0, 0, 1, 1], [], []>} : vector<128x32xbf16>, vector<32x32xbf16>, vector<128x32xf32> -> vector<128x32xf32>
    %87 = vector.broadcast %83 : vector<1x32xf32> to vector<128x32xf32>
    %88 = arith.addf %86, %87 : vector<128x32xf32>
    %89 = vector.shape_cast %88 : vector<128x32xf32> to vector<1x128x32xf32>
    %90 = tpu.transpose %89, [0, 2, 1] : vector<1x128x32xf32> -> vector<1x32x128xf32>
    %c0_29 = arith.constant 0 : index
    %c0_30 = arith.constant 0 : index
    %c0_31 = arith.constant 0 : index
    %91 = vector.load %arg8[%c0_29, %c0_30, %c0_31] : memref<1x32x128xf32, #tpu.memory_space<vmem>>, vector<1x32x128xf32>
    tpu.vector_store %arg8[%c0_29, %c0_30, %c0_31], %90 {strides = array<i32>} : memref<1x32x128xf32, #tpu.memory_space<vmem>>, vector<1x32x128xf32>,
    return
  }
  func.func @transform_0(%arg0: i32) -> (i32, i32, i32) {
    %c0_i32 = arith.constant 0 : i32
    %c0_i32_0 = arith.constant 0 : i32
    %c0_i32_1 = arith.constant 0 : i32
    return %arg0, %c0_i32, %c0_i32_0 : i32, i32, i32
  }
  func.func @transform_1(%arg0: i32) -> (i32, i32) {
    %c0_i32 = arith.constant 0 : i32
    %c0_i32_0 = arith.constant 0 : i32
    %c0_i32_1 = arith.constant 0 : i32
    return %c0_i32, %c0_i32_0 : i32, i32
  }
  func.func @transform_2(%arg0: i32) -> (i32, i32) {
    %c0_i32 = arith.constant 0 : i32
    %c0_i32_0 = arith.constant 0 : i32
    %c0_i32_1 = arith.constant 0 : i32
    return %c0_i32, %c0_i32_0 : i32, i32
  }
  func.func @transform_3(%arg0: i32) -> (i32, i32) {
    %c0_i32 = arith.constant 0 : i32
    %c0_i32_0 = arith.constant 0 : i32
    %c0_i32_1 = arith.constant 0 : i32
    return %c0_i32, %c0_i32_0 : i32, i32
  }
  func.func @transform_4(%arg0: i32) -> (i32, i32) {
    %c0_i32 = arith.constant 0 : i32
    %c0_i32_0 = arith.constant 0 : i32
    %c0_i32_1 = arith.constant 0 : i32
    return %c0_i32, %c0_i32_0 : i32, i32
  }
  func.func @transform_5(%arg0: i32) -> (i32, i32) {
    %c0_i32 = arith.constant 0 : i32
    %c0_i32_0 = arith.constant 0 : i32
    %c0_i32_1 = arith.constant 0 : i32
    return %c0_i32, %c0_i32_0 : i32, i32
  }
  func.func @transform_6(%arg0: i32) -> (i32, i32) {
    %c0_i32 = arith.constant 0 : i32
    %c0_i32_0 = arith.constant 0 : i32
    %c0_i32_1 = arith.constant 0 : i32
    return %c0_i32, %c0_i32_0 : i32, i32
  }
  func.func @transform_7(%arg0: i32) -> (i32, i32, i32) {
    %c0_i32 = arith.constant 0 : i32
    %c0_i32_0 = arith.constant 0 : i32
    %c0_i32_1 = arith.constant 0 : i32
    return %arg0, %c0_i32, %c0_i32_0 : i32, i32, i32
  }
}

</mosaic_0001>

<llo_original>
// kernel: tpu_custom_call.1
$region0: #{tpu_custom_call.1}
  #allocation0 [shape = 'u32[]', space=smem, size = 0x4, offset = 0x4, fixed_abs, tag = 'smem constant byte address 0x4 - core index']
  #allocation1 [shape = 'u32[144,128]{1,0:T(1,128)}', space=vmem, size = 0x12000, scoped, tag = 'internal scratch']
  %s0 = inlined_call_operand.vmem [shape: f32[2,128,2], index: 0, kind: input, shape index: {}]
  %s1 = inlined_call_operand.vmem [shape: f32[2,32], index: 1, kind: input, shape index: {}]
  %s2 = inlined_call_operand.vmem [shape: f32[1,32], index: 2, kind: input, shape index: {}]
  %s3 = inlined_call_operand.vmem [shape: bf16[32,32], index: 3, kind: input, shape index: {}]
  %s4 = inlined_call_operand.vmem [shape: f32[1,32], index: 4, kind: input, shape index: {}]
  %s5 = inlined_call_operand.vmem [shape: bf16[32,32], index: 5, kind: input, shape index: {}]
  %s6 = inlined_call_operand.vmem [shape: f32[1,32], index: 6, kind: input, shape index: {}]
  %s7 = inlined_call_operand.hbm [shape: f32[2,32,128], index: 7, kind: output, shape index: {}]
  %s8 = sld [smem:[#allocation0]]
  $region61: #{tpu_custom_call.1} parent=0
    _
  %s10 = ssub.s32 1, %s8
  %s11 = scalar_select 0, %s10, %s8
  $region1: #{tpu_custom_call.1} parent=0
    #allocation2 [shape = 'u8[32768]{0}', space=vmem, size = 0x8000, scoped, tag = 'output window, operand 0']
    #allocation3 [shape = 's32[2]{0}', space=sflag, size = 0x8, scoped, tag = 'scoped memory for tpu_custom_call.1']
    %12 = vsyncpa [#allocation3], 0
    %s13 = scalar_lea.sflag [#allocation3], 1
    %14 = vsyncpa %s13, 0
    loop: start=0, step=1, limit=4
    $region2: #{tpu_custom_call.1} parent=1 // loop_pre_header
      _
    $region3: #{tpu_custom_call.1} parent=1 // loop_header
      %s16 = sphi 0, %s20
      %p17 = scmp.ge.s32.totalorder %s16, 4
      %s26 = sphi 0, %s28
      %s29 = sphi 0, %s26
      %s30 = sphi 0, %s29
      %s46 = sphi 0, %s30
      %s50 = sphi 0, %s50
      %s52 = sphi 0, %s50
      %s53 = sphi 0, %s52
      %s67 = sphi 0, %s53
      %s71 = sphi 0, %s71
      %s73 = sphi 0, %s71
      %s74 = sphi 0, %s73
      %s88 = sphi 0, %s74
      %s92 = sphi 0, %s92
      %s94 = sphi 0, %s92
      %s95 = sphi 0, %s94
      %s109 = sphi 0, %s95
      %s113 = sphi 0, %s113
      %s115 = sphi 0, %s113
      %s116 = sphi 0, %s115
      %s130 = sphi 0, %s116
      %s134 = sphi 0, %s134
      %s136 = sphi 0, %s134
      %s137 = sphi 0, %s136
      %s151 = sphi 0, %s137
      %s155 = sphi 0, %s155
      %s157 = sphi 0, %s155
      %s158 = sphi 0, %s157
      %s172 = sphi 0, %s158
      %s178 = sphi 0, %s180
      %s181 = sphi 0, %s178
      %s182 = sphi 0, %s181
      %s198 = sphi 0, %s182
    $region4: #{tpu_custom_call.1} parent=1 // loop_header_branch
      %19 = sbr.rel (%p17) target = $region8
    $region5: #{tpu_custom_call.1} parent=1 // loop_body
      %s21 = ssub.s32 %s16, 1
      %s22 = ssub.s32 %s16, 2
      %s23 = sadd.s32 %s16, 1
      %s24 = ssub.s32 %s16, %s23
      %p25 = scmp.eq.s32.totalorder %s24, 0
      %s27 = sadd.s32 %s26, 1
      %s28 = scalar_select %p25, %s26, %s27
      %p31 = pneg %p25
      %p32 = scmp.eq.s32.totalorder %s16, 1
      %p33 = por %p31, %p32
      %p34 = scmp.ne.s32.totalorder %s26, %s29
      %p35 = scmp.eq.s32.totalorder %s16, 0
      %p36 = por %p34, %p35
      %p37 = scmp.ne.s32.totalorder %s26, %s29
      %p38 = scmp.eq.s32.totalorder %s21, 1
      %p39 = por %p37, %p38
      %p40 = scmp.ne.s32.totalorder %s29, %s30
      %p41 = scmp.eq.s32.totalorder %s21, 0
      %p42 = por %p40, %p41
      %p43 = scmp.ne.s32.totalorder %s29, %s30
      %p44 = scmp.eq.s32.totalorder %s22, 1
      %p45 = por %p43, %p44
      %p47 = scmp.ne.s32.totalorder %s30, %s46
      %p48 = scmp.eq.s32.totalorder %s22, 0
      %p49 = por %p47, %p48
      %s51 = sadd.s32 %s50, 1
      %p54 = scmp.eq.s32.totalorder %s16, 1
      %p55 = scmp.ne.s32.totalorder %s50, %s52
      %p56 = scmp.eq.s32.totalorder %s16, 0
      %p57 = por %p55, %p56
      %p58 = scmp.ne.s32.totalorder %s50, %s52
      %p59 = scmp.eq.s32.totalorder %s21, 1
      %p60 = por %p58, %p59
      %p61 = scmp.ne.s32.totalorder %s52, %s53
      %p62 = scmp.eq.s32.totalorder %s21, 0
      %p63 = por %p61, %p62
      %p64 = scmp.ne.s32.totalorder %s52, %s53
      %p65 = scmp.eq.s32.totalorder %s22, 1
      %p66 = por %p64, %p65
      %p68 = scmp.ne.s32.totalorder %s53, %s67
      %p69 = scmp.eq.s32.totalorder %s22, 0
      %p70 = por %p68, %p69
      %s72 = sadd.s32 %s71, 1
      %p75 = scmp.eq.s32.totalorder %s16, 1
      %p76 = scmp.ne.s32.totalorder %s71, %s73
      %p77 = scmp.eq.s32.totalorder %s16, 0
      %p78 = por %p76, %p77
      %p79 = scmp.ne.s32.totalorder %s71, %s73
      %p80 = scmp.eq.s32.totalorder %s21, 1
      %p81 = por %p79, %p80
      %p82 = scmp.ne.s32.totalorder %s73, %s74
      %p83 = scmp.eq.s32.totalorder %s21, 0
      %p84 = por %p82, %p83
      %p85 = scmp.ne.s32.totalorder %s73, %s74
      %p86 = scmp.eq.s32.totalorder %s22, 1
      %p87 = por %p85, %p86
      %p89 = scmp.ne.s32.totalorder %s74, %s88
      %p90 = scmp.eq.s32.totalorder %s22, 0
      %p91 = por %p89, %p90
      %s93 = sadd.s32 %s92, 1
      %p96 = scmp.eq.s32.totalorder %s16, 1
      %p97 = scmp.ne.s32.totalorder %s92, %s94
      %p98 = scmp.eq.s32.totalorder %s16, 0
      %p99 = por %p97, %p98
      %p100 = scmp.ne.s32.totalorder %s92, %s94
      %p101 = scmp.eq.s32.totalorder %s21, 1
      %p102 = por %p100, %p101
      %p103 = scmp.ne.s32.totalorder %s94, %s95
      %p104 = scmp.eq.s32.totalorder %s21, 0
      %p105 = por %p103, %p104
      %p106 = scmp.ne.s32.totalorder %s94, %s95
      %p107 = scmp.eq.s32.totalorder %s22, 1
      %p108 = por %p106, %p107
      %p110 = scmp.ne.s32.totalorder %s95, %s109
      %p111 = scmp.eq.s32.totalorder %s22, 0
      %p112 = por %p110, %p111
      %s114 = sadd.s32 %s113, 1
      %p117 = scmp.eq.s32.totalorder %s16, 1
      %p118 = scmp.ne.s32.totalorder %s113, %s115
      %p119 = scmp.eq.s32.totalorder %s16, 0
      %p120 = por %p118, %p119
      %p121 = scmp.ne.s32.totalorder %s113, %s115
      %p122 = scmp.eq.s32.totalorder %s21, 1
      %p123 = por %p121, %p122
      %p124 = scmp.ne.s32.totalorder %s115, %s116
      %p125 = scmp.eq.s32.totalorder %s21, 0
      %p126 = por %p124, %p125
      %p127 = scmp.ne.s32.totalorder %s115, %s116
      %p128 = scmp.eq.s32.totalorder %s22, 1
      %p129 = por %p127, %p128
      %p131 = scmp.ne.s32.totalorder %s116, %s130
      %p132 = scmp.eq.s32.totalorder %s22, 0
      %p133 = por %p131, %p132
      %s135 = sadd.s32 %s134, 1
      %p138 = scmp.eq.s32.totalorder %s16, 1
      %p139 = scmp.ne.s32.totalorder %s134, %s136
      %p140 = scmp.eq.s32.totalorder %s16, 0
      %p141 = por %p139, %p140
      %p142 = scmp.ne.s32.totalorder %s134, %s136
      %p143 = scmp.eq.s32.totalorder %s21, 1
      %p144 = por %p142, %p143
      %p145 = scmp.ne.s32.totalorder %s136, %s137
      %p146 = scmp.eq.s32.totalorder %s21, 0
      %p147 = por %p145, %p146
      %p148 = scmp.ne.s32.totalorder %s136, %s137
      %p149 = scmp.eq.s32.totalorder %s22, 1
      %p150 = por %p148, %p149
      %p152 = scmp.ne.s32.totalorder %s137, %s151
      %p153 = scmp.eq.s32.totalorder %s22, 0
      %p154 = por %p152, %p153
      %s156 = sadd.s32 %s155, 1
      %p159 = scmp.eq.s32.totalorder %s16, 1
      %p160 = scmp.ne.s32.totalorder %s155, %s157
      %p161 = scmp.eq.s32.totalorder %s16, 0
      %p162 = por %p160, %p161
      %p163 = scmp.ne.s32.totalorder %s155, %s157
      %p164 = scmp.eq.s32.totalorder %s21, 1
      %p165 = por %p163, %p164
      %p166 = scmp.ne.s32.totalorder %s157, %s158
      %p167 = scmp.eq.s32.totalorder %s21, 0
      %p168 = por %p166, %p167
      %p169 = scmp.ne.s32.totalorder %s157, %s158
      %p170 = scmp.eq.s32.totalorder %s22, 1
      %p171 = por %p169, %p170
      %p173 = scmp.ne.s32.totalorder %s158, %s172
      %p174 = scmp.eq.s32.totalorder %s22, 0
      %p175 = por %p173, %p174
      %s176 = ssub.s32 %s16, %s23
      %p177 = scmp.eq.s32.totalorder %s176, 0
      %s179 = sadd.s32 %s178, 1
      %s180 = scalar_select %p177, %s178, %s179
      %p183 = pneg %p177
      %p184 = scmp.eq.s32.totalorder %s16, 1
      %p185 = por %p183, %p184
      %p186 = scmp.ne.s32.totalorder %s178, %s181
      %p187 = scmp.eq.s32.totalorder %s16, 0
      %p188 = por %p186, %p187
      %p189 = scmp.ne.s32.totalorder %s178, %s181
      %p190 = scmp.eq.s32.totalorder %s21, 1
      %p191 = por %p189, %p190
      %p192 = scmp.ne.s32.totalorder %s181, %s182
      %p193 = scmp.eq.s32.totalorder %s21, 0
      %p194 = por %p192, %p193
      %p195 = scmp.ne.s32.totalorder %s181, %s182
      %p196 = scmp.eq.s32.totalorder %s22, 1
      %p197 = por %p195, %p196
      %p199 = scmp.ne.s32.totalorder %s182, %s198
      %p200 = scmp.eq.s32.totalorder %s22, 0
      %p201 = por %p199, %p200
      %p202 = scmp.le.s32.totalorder 1, %s16
      %p203 = scmp.lt.s32.totalorder %s16, 3
      %p204 = pnand %p202, %p203
      %p205 = pneg %p204
      // Predicated region
      $region9: #{tpu_custom_call.1} parent=5 // pred_check
        _
      $region10: #{tpu_custom_call.1} parent=5 // pred_check_branch
        %207 = sbr.rel (%p204) target = $region12
      $region11: #{tpu_custom_call.1} parent=5 // pred_region
        %s208 = ssub.s32 %s16, 1
        // Predicated region
        $region13: #{tpu_custom_call.1} parent=11 // pred_check
          %p209 = pneg %p63
        $region14: #{tpu_custom_call.1} parent=11 // pred_check_branch
          %211 = sbr.rel (%p209) target = $region16
        $region15: #{tpu_custom_call.1} parent=11 // pred_region
          _
        $region16: #{tpu_custom_call.1} parent=11 // pred_fallthru
          _
        // Predicated region
        $region17: #{tpu_custom_call.1} parent=11 // pred_check
          %p212 = pneg %p84
        $region18: #{tpu_custom_call.1} parent=11 // pred_check_branch
          %214 = sbr.rel (%p212) target = $region20
        $region19: #{tpu_custom_call.1} parent=11 // pred_region
          _
        $region20: #{tpu_custom_call.1} parent=11 // pred_fallthru
          _
        // Predicated region
        $region21: #{tpu_custom_call.1} parent=11 // pred_check
          %p215 = pneg %p105
        $region22: #{tpu_custom_call.1} parent=11 // pred_check_branch
          %217 = sbr.rel (%p215) target = $region24
        $region23: #{tpu_custom_call.1} parent=11 // pred_region
          _
        $region24: #{tpu_custom_call.1} parent=11 // pred_fallthru
          _
        // Predicated region
        $region25: #{tpu_custom_call.1} parent=11 // pred_check
          %p218 = pneg %p126
        $region26: #{tpu_custom_call.1} parent=11 // pred_check_branch
          %220 = sbr.rel (%p218) target = $region28
        $region27: #{tpu_custom_call.1} parent=11 // pred_region
          _
        $region28: #{tpu_custom_call.1} parent=11 // pred_fallthru
          _
        // Predicated region
        $region29: #{tpu_custom_call.1} parent=11 // pred_check
          %p221 = pneg %p147
        $region30: #{tpu_custom_call.1} parent=11 // pred_check_branch
          %223 = sbr.rel (%p221) target = $region32
        $region31: #{tpu_custom_call.1} parent=11 // pred_region
          _
        $region32: #{tpu_custom_call.1} parent=11 // pred_fallthru
          _
        // Predicated region
        $region33: #{tpu_custom_call.1} parent=11 // pred_check
          %p224 = pneg %p168
        $region34: #{tpu_custom_call.1} parent=11 // pred_check_branch
          %226 = sbr.rel (%p224) target = $region36
        $region35: #{tpu_custom_call.1} parent=11 // pred_region
          _
        $region36: #{tpu_custom_call.1} parent=11 // pred_fallthru
          _
      $region12: #{tpu_custom_call.1} parent=5 // pred_fallthru
        _
      %p227 = scmp.lt.s32.totalorder %s16, 2
      // Predicated region
      $region37: #{tpu_custom_call.1} parent=5 // pred_check
        %p228 = pneg %p227
      $region38: #{tpu_custom_call.1} parent=5 // pred_check_branch
        %230 = sbr.rel (%p228) target = $region40
      $region39: #{tpu_custom_call.1} parent=5 // pred_region
        // Predicated region
        $region41: #{tpu_custom_call.1} parent=39 // pred_check
          %p231 = pneg %p36
        $region42: #{tpu_custom_call.1} parent=39 // pred_check_branch
          %233 = sbr.rel (%p231) target = $region44
        $region43: #{tpu_custom_call.1} parent=39 // pred_region
          %p234 = scmp.lt.s32.totalorder %s16, 1
          %s235 = scalar_select %p234, %s16, 1
          %s236 = smul.addr %s235, 16
          %s237 = smul.addr %s236, 8
          %s238 = scalar_lea.vmem %s0, %s237
        $region44: #{tpu_custom_call.1} parent=39 // pred_fallthru
          _
      $region40: #{tpu_custom_call.1} parent=5 // pred_fallthru
        _
      %p239 = scmp.le.s32.totalorder 1, %s16
      %p240 = scmp.lt.s32.totalorder %s16, 3
      %p241 = pnand %p239, %p240
      %p242 = pneg %p241
      // Predicated region
      $region45: #{tpu_custom_call.1} parent=5 // pred_check
        _
      $region46: #{tpu_custom_call.1} parent=5 // pred_check_branch
        %244 = sbr.rel (%p241) target = $region48
      $region47: #{tpu_custom_call.1} parent=5 // pred_region
        %s245 = ssub.s32 %s16, 1
        %p246 = scmp.lt.s32.totalorder %s21, 1
        %s247 = scalar_select %p246, %s21, 1
        %s248 = smul.addr %s247, 16
        %s249 = smul.addr %s248, 8
        %s250 = scalar_lea.vmem %s0, %s249
        %p251 = pneg %p42
        %p252 = pneg %p39
        %p253 = pneg %p63
        %p254 = pneg %p60
        %p255 = pneg %p84
        %p256 = pneg %p81
        %p257 = pneg %p105
        %p258 = pneg %p102
        %p259 = pneg %p126
        %p260 = pneg %p123
        %p261 = pneg %p147
        %p262 = pneg %p144
        %p263 = pneg %p168
        %p264 = pneg %p165
        %p265 = pneg %p194
        %p266 = pneg %p191
        %s267 = sand.u32 %s181, 1
        %s268 = scalar_lea.sflag [#allocation3], %s267
        %s269 = sand.u32 %s181, 1
        %s270 = smul.addr %s269, 32
        %s271 = scalar_lea.vmem [#allocation2], %s270
        %p272 = scmp.lt.s32.totalorder %s21, 1
        %s273 = scalar_select %p272, %s21, 1
        %s274 = smul.addr %s273, 16
        %s275 = smul.addr %s274, 8
        %s276 = scalar_lea.vmem %s0, %s275
        %v278 = vld [vmem:[%s276] sm:$0xff]
        %v279 = vld [vmem:[%s276 + $0x8] sm:$0xff]
        %v280 = vld [vmem:[%s276 + $0x10] sm:$0xff]
        %v281 = vld [vmem:[%s276 + $0x18] sm:$0xff]
        %v282 = vld [vmem:[%s276 + $0x20] sm:$0xff]
        %v283 = vld [vmem:[%s276 + $0x28] sm:$0xff]
        %v284 = vld [vmem:[%s276 + $0x30] sm:$0xff]
        %v285 = vld [vmem:[%s276 + $0x38] sm:$0xff]
        %v286 = vld [vmem:[%s276 + $0x40] sm:$0xff]
        %v287 = vld [vmem:[%s276 + $0x48] sm:$0xff]
        %v288 = vld [vmem:[%s276 + $0x50] sm:$0xff]
        %v289 = vld [vmem:[%s276 + $0x58] sm:$0xff]
        %v290 = vld [vmem:[%s276 + $0x60] sm:$0xff]
        %v291 = vld [vmem:[%s276 + $0x68] sm:$0xff]
        %v292 = vld [vmem:[%s276 + $0x70] sm:$0xff]
        %v293 = vld [vmem:[%s276 + $0x78] sm:$0xff]
        %v294 = vlaneseq
        %v295 = vshrl.u32 %v294, 7
        %v296 = vadd.s32 %v295, 8
        %v297 = vadd.s32 %v295, 16
        %v298 = vadd.s32 %v295, 24
        %v299 = vadd.s32 %v295, 32
        %v300 = vadd.s32 %v295, 40
        %v301 = vadd.s32 %v295, 48
        %v302 = vadd.s32 %v295, 56
        %v303 = vadd.s32 %v295, 64
        %v304 = vadd.s32 %v295, 72
        %v305 = vadd.s32 %v295, 80
        %v306 = vadd.s32 %v295, 88
        %v307 = vadd.s32 %v295, 96
        %v308 = vadd.s32 %v295, 104
        %v309 = vadd.s32 %v295, 112
        %v310 = vadd.s32 %v295, 120
        %vm311 = vcmp.lt.s32.totalorder %v295, 16
        %vm312 = vcmp.lt.s32.totalorder %v296, 16
        %vm313 = vcmp.lt.s32.totalorder %v297, 16
        %vm314 = vcmp.lt.s32.totalorder %v298, 16
        %vm315 = vcmp.lt.s32.totalorder %v299, 16
        %vm316 = vcmp.lt.s32.totalorder %v300, 16
        %vm317 = vcmp.lt.s32.totalorder %v301, 16
        %vm318 = vcmp.lt.s32.totalorder %v302, 16
        %vm319 = vcmp.lt.s32.totalorder %v303, 16
        %vm320 = vcmp.lt.s32.totalorder %v304, 16
        %vm321 = vcmp.lt.s32.totalorder %v305, 16
        %vm322 = vcmp.lt.s32.totalorder %v306, 16
        %vm323 = vcmp.lt.s32.totalorder %v307, 16
        %vm324 = vcmp.lt.s32.totalorder %v308, 16
        %vm325 = vcmp.lt.s32.totalorder %v309, 16
        %vm326 = vcmp.lt.s32.totalorder %v310, 16
        %v327 = vsel %vm311, 1, 0
        %v328 = vsel %vm312, 1, 0
        %v329 = vsel %vm313, 1, 0
        %v330 = vsel %vm314, 1, 0
        %v331 = vsel %vm315, 1, 0
        %v332 = vsel %vm316, 1, 0
        %v333 = vsel %vm317, 1, 0
        %v334 = vsel %vm318, 1, 0
        %v335 = vsel %vm319, 1, 0
        %v336 = vsel %vm320, 1, 0
        %v337 = vsel %vm321, 1, 0
        %v338 = vsel %vm322, 1, 0
        %v339 = vsel %vm323, 1, 0
        %v340 = vsel %vm324, 1, 0
        %v341 = vsel %vm325, 1, 0
        %v342 = vsel %vm326, 1, 0
        %v343 = vcvt.s32.f32 %v327
        %v344 = vcvt.s32.f32 %v328
        %v345 = vcvt.s32.f32 %v329
        %v346 = vcvt.s32.f32 %v330
        %v347 = vcvt.s32.f32 %v331
        %v348 = vcvt.s32.f32 %v332
        %v349 = vcvt.s32.f32 %v333
        %v350 = vcvt.s32.f32 %v334
        %v351 = vcvt.s32.f32 %v335
        %v352 = vcvt.s32.f32 %v336
        %v353 = vcvt.s32.f32 %v337
        %v354 = vcvt.s32.f32 %v338
        %v355 = vcvt.s32.f32 %v339
        %v356 = vcvt.s32.f32 %v340
        %v357 = vcvt.s32.f32 %v341
        %v358 = vcvt.s32.f32 %v342
        %v359 = vld [vmem:[%s1] sm:$0x3]
        %v360 = vld [vmem:[%s2] sm:$0x1]
        %362 = vset.pattern.permute.xlu0 0
        %363 = vperm.xlu0 %362, %v278
        %v364 = vpop.permute.xlu0 %363
        %367 = vset.pattern.permute.xlu0 0
        %368 = vperm.xlu0 %367, %v279
        %v369 = vpop.permute.xlu0 %368
        %372 = vset.pattern.permute.xlu0 0
        %373 = vperm.xlu0 %372, %v280
        %v374 = vpop.permute.xlu0 %373
        %377 = vset.pattern.permute.xlu0 0
        %378 = vperm.xlu0 %377, %v281
        %v379 = vpop.permute.xlu0 %378
        %382 = vset.pattern.permute.xlu0 0
        %383 = vperm.xlu0 %382, %v282
        %v384 = vpop.permute.xlu0 %383
        %387 = vset.pattern.permute.xlu0 0
        %388 = vperm.xlu0 %387, %v283
        %v389 = vpop.permute.xlu0 %388
        %392 = vset.pattern.permute.xlu0 0
        %393 = vperm.xlu0 %392, %v284
        %v394 = vpop.permute.xlu0 %393
        %397 = vset.pattern.permute.xlu0 0
        %398 = vperm.xlu0 %397, %v285
        %v399 = vpop.permute.xlu0 %398
        %402 = vset.pattern.permute.xlu0 0
        %403 = vperm.xlu0 %402, %v286
        %v404 = vpop.permute.xlu0 %403
        %407 = vset.pattern.permute.xlu0 0
        %408 = vperm.xlu0 %407, %v287
        %v409 = vpop.permute.xlu0 %408
        %412 = vset.pattern.permute.xlu0 0
        %413 = vperm.xlu0 %412, %v288
        %v414 = vpop.permute.xlu0 %413
        %417 = vset.pattern.permute.xlu0 0
        %418 = vperm.xlu0 %417, %v289
        %v419 = vpop.permute.xlu0 %418
        %422 = vset.pattern.permute.xlu0 0
        %423 = vperm.xlu0 %422, %v290
        %v424 = vpop.permute.xlu0 %423
        %427 = vset.pattern.permute.xlu0 0
        %428 = vperm.xlu0 %427, %v291
        %v429 = vpop.permute.xlu0 %428
        %432 = vset.pattern.permute.xlu0 0
        %433 = vperm.xlu0 %432, %v292
        %v434 = vpop.permute.xlu0 %433
        %437 = vset.pattern.permute.xlu0 0
        %438 = vperm.xlu0 %437, %v293
        %v439 = vpop.permute.xlu0 %438
        %v441 = vlaneseq
        %v442 = vshrl.u32 %v441, 7
        %v443 = vsub.s32 0, %v442
        %v444 = vrot.slane %v359, %v443
        %v445 = vmul.f32 %v364, %v444
        %v446 = vmul.f32 %v369, %v444
        %v447 = vmul.f32 %v374, %v444
        %v448 = vmul.f32 %v379, %v444
        %v449 = vmul.f32 %v384, %v444
        %v450 = vmul.f32 %v389, %v444
        %v451 = vmul.f32 %v394, %v444
        %v452 = vmul.f32 %v399, %v444
        %v453 = vmul.f32 %v404, %v444
        %v454 = vmul.f32 %v409, %v444
        %v455 = vmul.f32 %v414, %v444
        %v456 = vmul.f32 %v419, %v444
        %v457 = vmul.f32 %v424, %v444
        %v458 = vmul.f32 %v429, %v444
        %v459 = vmul.f32 %v434, %v444
        %v460 = vmul.f32 %v439, %v444
        %461 = vset.pattern.permute.xlu0 1
        %462 = vperm.xlu0 %461, %v278
        %v463 = vpop.permute.xlu0 %462
        %465 = vset.pattern.permute.xlu0 1
        %466 = vperm.xlu0 %465, %v279
        %v467 = vpop.permute.xlu0 %466
        %469 = vset.pattern.permute.xlu0 1
        %470 = vperm.xlu0 %469, %v280
        %v471 = vpop.permute.xlu0 %470
        %473 = vset.pattern.permute.xlu0 1
        %474 = vperm.xlu0 %473, %v281
        %v475 = vpop.permute.xlu0 %474
        %477 = vset.pattern.permute.xlu0 1
        %478 = vperm.xlu0 %477, %v282
        %v479 = vpop.permute.xlu0 %478
        %481 = vset.pattern.permute.xlu0 1
        %482 = vperm.xlu0 %481, %v283
        %v483 = vpop.permute.xlu0 %482
        %485 = vset.pattern.permute.xlu0 1
        %486 = vperm.xlu0 %485, %v284
        %v487 = vpop.permute.xlu0 %486
        %489 = vset.pattern.permute.xlu0 1
        %490 = vperm.xlu0 %489, %v285
        %v491 = vpop.permute.xlu0 %490
        %493 = vset.pattern.permute.xlu0 1
        %494 = vperm.xlu0 %493, %v286
        %v495 = vpop.permute.xlu0 %494
        %497 = vset.pattern.permute.xlu0 1
        %498 = vperm.xlu0 %497, %v287
        %v499 = vpop.permute.xlu0 %498
        %501 = vset.pattern.permute.xlu0 1
        %502 = vperm.xlu0 %501, %v288
        %v503 = vpop.permute.xlu0 %502
        %505 = vset.pattern.permute.xlu0 1
        %506 = vperm.xlu0 %505, %v289
        %v507 = vpop.permute.xlu0 %506
        %509 = vset.pattern.permute.xlu0 1
        %510 = vperm.xlu0 %509, %v290
        %v511 = vpop.permute.xlu0 %510
        %513 = vset.pattern.permute.xlu0 1
        %514 = vperm.xlu0 %513, %v291
        %v515 = vpop.permute.xlu0 %514
        %517 = vset.pattern.permute.xlu0 1
        %518 = vperm.xlu0 %517, %v292
        %v519 = vpop.permute.xlu0 %518
        %521 = vset.pattern.permute.xlu0 1
        %522 = vperm.xlu0 %521, %v293
        %v523 = vpop.permute.xlu0 %522
        %v525 = vlaneseq
        %v526 = vshrl.u32 %v525, 7
        %v527 = vsub.s32 1, %v526
        %v528 = vrot.slane %v359, %v527
        %v529 = vmul.f32 %v463, %v528
        %v530 = vmul.f32 %v467, %v528
        %v531 = vmul.f32 %v471, %v528
        %v532 = vmul.f32 %v475, %v528
        %v533 = vmul.f32 %v479, %v528
        %v534 = vmul.f32 %v483, %v528
        %v535 = vmul.f32 %v487, %v528
        %v536 = vmul.f32 %v491, %v528
        %v537 = vmul.f32 %v495, %v528
        %v538 = vmul.f32 %v499, %v528
        %v539 = vmul.f32 %v503, %v528
        %v540 = vmul.f32 %v507, %v528
        %v541 = vmul.f32 %v511, %v528
        %v542 = vmul.f32 %v515, %v528
        %v543 = vmul.f32 %v519, %v528
        %v544 = vmul.f32 %v523, %v528
        %v545 = vadd.f32 %v445, %v529
        %v546 = vadd.f32 %v446, %v530
        %v547 = vadd.f32 %v447, %v531
        %v548 = vadd.f32 %v448, %v532
        %v549 = vadd.f32 %v449, %v533
        %v550 = vadd.f32 %v450, %v534
        %v551 = vadd.f32 %v451, %v535
        %v552 = vadd.f32 %v452, %v536
        %v553 = vadd.f32 %v453, %v537
        %v554 = vadd.f32 %v454, %v538
        %v555 = vadd.f32 %v455, %v539
        %v556 = vadd.f32 %v456, %v540
        %v557 = vadd.f32 %v457, %v541
        %v558 = vadd.f32 %v458, %v542
        %v559 = vadd.f32 %v459, %v543
        %v560 = vadd.f32 %v460, %v544
        %v562 = vlaneseq
        %v563 = vshrl.u32 %v562, 7
        %v564 = vsub.s32 0, %v563
        %v565 = vrot.slane %v360, %v564
        %v567 = vadd.f32 %v545, %v565
        %v568 = vadd.f32 %v546, %v565
        %v569 = vadd.f32 %v547, %v565
        %v570 = vadd.f32 %v548, %v565
        %v571 = vadd.f32 %v549, %v565
        %v572 = vadd.f32 %v550, %v565
        %v573 = vadd.f32 %v551, %v565
        %v574 = vadd.f32 %v552, %v565
        %v575 = vadd.f32 %v553, %v565
        %v576 = vadd.f32 %v554, %v565
        %v577 = vadd.f32 %v555, %v565
        %v578 = vadd.f32 %v556, %v565
        %v579 = vadd.f32 %v557, %v565
        %v580 = vadd.f32 %v558, %v565
        %v581 = vadd.f32 %v559, %v565
        %v582 = vadd.f32 %v560, %v565
        %v583 = vmul.f32 %v567, %v343
        %v584 = vmul.f32 %v568, %v344
        %v585 = vmul.f32 %v569, %v345
        %v586 = vmul.f32 %v570, %v346
        %v587 = vmul.f32 %v571, %v347
        %v588 = vmul.f32 %v572, %v348
        %v589 = vmul.f32 %v573, %v349
        %v590 = vmul.f32 %v574, %v350
        %v591 = vmul.f32 %v575, %v351
        %v592 = vmul.f32 %v576, %v352
        %v593 = vmul.f32 %v577, %v353
        %v594 = vmul.f32 %v578, %v354
        %v595 = vmul.f32 %v579, %v355
        %v596 = vmul.f32 %v580, %v356
        %v597 = vmul.f32 %v581, %v357
        %v598 = vmul.f32 %v582, %v358
        %vm599 = vcmask 261120
        %v600 = vsel %vm599, %v583, 0.0
        %v601 = vsel %vm599, %v584, 0.0
        %v602 = vadd.f32 %v600, %v601
        %v603 = vsel %vm599, %v585, 0.0
        %v604 = vadd.f32 %v602, %v603
        %v605 = vsel %vm599, %v586, 0.0
        %v606 = vadd.f32 %v604, %v605
        %v607 = vsel %vm599, %v587, 0.0
        %v608 = vadd.f32 %v606, %v607
        %v609 = vsel %vm599, %v588, 0.0
        %v610 = vadd.f32 %v608, %v609
        %v611 = vsel %vm599, %v589, 0.0
        %v612 = vadd.f32 %v610, %v611
        %v613 = vsel %vm599, %v590, 0.0
        %v614 = vadd.f32 %v612, %v613
        %v615 = vsel %vm599, %v591, 0.0
        %v616 = vadd.f32 %v614, %v615
        %v617 = vsel %vm599, %v592, 0.0
        %v618 = vadd.f32 %v616, %v617
        %v619 = vsel %vm599, %v593, 0.0
        %v620 = vadd.f32 %v618, %v619
        %v621 = vsel %vm599, %v594, 0.0
        %v622 = vadd.f32 %v620, %v621
        %v623 = vsel %vm599, %v595, 0.0
        %v624 = vadd.f32 %v622, %v623
        %v625 = vsel %vm599, %v596, 0.0
        %v626 = vadd.f32 %v624, %v625
        %v627 = vsel %vm599, %v597, 0.0
        %v628 = vadd.f32 %v626, %v627
        %v629 = vsel %vm599, %v598, 0.0
        %v630 = vadd.f32 %v628, %v629
        %v631 = vrot.slane %v630, 4
        %v632 = vadd.f32 %v630, %v631
        %v633 = vrot.slane %v632, 2
        %v634 = vadd.f32 %v632, %v633
        %v635 = vrot.slane %v634, 1
        %v636 = vadd.f32 %v634, %v635
        %v637 = vmul.f32 %v583, %v583
        %v638 = vmul.f32 %v584, %v584
        %v639 = vmul.f32 %v585, %v585
        %v640 = vmul.f32 %v586, %v586
        %v641 = vmul.f32 %v587, %v587
        %v642 = vmul.f32 %v588, %v588
        %v643 = vmul.f32 %v589, %v589
        %v644 = vmul.f32 %v590, %v590
        %v645 = vmul.f32 %v591, %v591
        %v646 = vmul.f32 %v592, %v592
        %v647 = vmul.f32 %v593, %v593
        %v648 = vmul.f32 %v594, %v594
        %v649 = vmul.f32 %v595, %v595
        %v650 = vmul.f32 %v596, %v596
        %v651 = vmul.f32 %v597, %v597
        %v652 = vmul.f32 %v598, %v598
        %v653 = vsel %vm599, %v637, 0.0
        %v654 = vsel %vm599, %v638, 0.0
        %v655 = vadd.f32 %v653, %v654
        %v656 = vsel %vm599, %v639, 0.0
        %v657 = vadd.f32 %v655, %v656
        %v658 = vsel %vm599, %v640, 0.0
        %v659 = vadd.f32 %v657, %v658
        %v660 = vsel %vm599, %v641, 0.0
        %v661 = vadd.f32 %v659, %v660
        %v662 = vsel %vm599, %v642, 0.0
        %v663 = vadd.f32 %v661, %v662
        %v664 = vsel %vm599, %v643, 0.0
        %v665 = vadd.f32 %v663, %v664
        %v666 = vsel %vm599, %v644, 0.0
        %v667 = vadd.f32 %v665, %v666
        %v668 = vsel %vm599, %v645, 0.0
        %v669 = vadd.f32 %v667, %v668
        %v670 = vsel %vm599, %v646, 0.0
        %v671 = vadd.f32 %v669, %v670
        %v672 = vsel %vm599, %v647, 0.0
        %v673 = vadd.f32 %v671, %v672
        %v674 = vsel %vm599, %v648, 0.0
        %v675 = vadd.f32 %v673, %v674
        %v676 = vsel %vm599, %v649, 0.0
        %v677 = vadd.f32 %v675, %v676
        %v678 = vsel %vm599, %v650, 0.0
        %v679 = vadd.f32 %v677, %v678
        %v680 = vsel %vm599, %v651, 0.0
        %v681 = vadd.f32 %v679, %v680
        %v682 = vsel %vm599, %v652, 0.0
        %v683 = vadd.f32 %v681, %v682
        %v684 = vrot.slane %v683, 4
        %v685 = vadd.f32 %v683, %v684
        %v686 = vrot.slane %v685, 2
        %v687 = vadd.f32 %v685, %v686
        %v688 = vrot.slane %v687, 1
        %v689 = vadd.f32 %v687, %v688
        %v690 = vmul.f32 %v636, 0.0625
        %v691 = vmul.f32 %v689, 0.0625
        %v692 = vmul.f32 %v690, %v690
        %v693 = vsub.f32 %v691, %v692
        %v694 = vmax.f32 %v693, 0.0
        %v695 = vsub.f32 %v567, %v690
        %v696 = vsub.f32 %v568, %v690
        %v697 = vsub.f32 %v569, %v690
        %v698 = vsub.f32 %v570, %v690
        %v699 = vsub.f32 %v571, %v690
        %v700 = vsub.f32 %v572, %v690
        %v701 = vsub.f32 %v573, %v690
        %v702 = vsub.f32 %v574, %v690
        %v703 = vsub.f32 %v575, %v690
        %v704 = vsub.f32 %v576, %v690
        %v705 = vsub.f32 %v577, %v690
        %v706 = vsub.f32 %v578, %v690
        %v707 = vsub.f32 %v579, %v690
        %v708 = vsub.f32 %v580, %v690
        %v709 = vsub.f32 %v581, %v690
        %v710 = vsub.f32 %v582, %v690
        %v711 = vadd.f32 %v694, 1e-05
        %v712 = vrsqrt.pop %v711
        %v713 = vmul.f32 %v695, %v712
        %v714 = vmul.f32 %v696, %v712
        %v715 = vmul.f32 %v697, %v712
        %v716 = vmul.f32 %v698, %v712
        %v717 = vmul.f32 %v699, %v712
        %v718 = vmul.f32 %v700, %v712
        %v719 = vmul.f32 %v701, %v712
        %v720 = vmul.f32 %v702, %v712
        %v721 = vmul.f32 %v703, %v712
        %v722 = vmul.f32 %v704, %v712
        %v723 = vmul.f32 %v705, %v712
        %v724 = vmul.f32 %v706, %v712
        %v725 = vmul.f32 %v707, %v712
        %v726 = vmul.f32 %v708, %v712
        %v727 = vmul.f32 %v709, %v712
        %v728 = vmul.f32 %v710, %v712
        %v729 = vmax.f32 %v713, 0.0
        %v730 = vmax.f32 %v714, 0.0
        %v731 = vmax.f32 %v715, 0.0
        %v732 = vmax.f32 %v716, 0.0
        %v733 = vmax.f32 %v717, 0.0
        %v734 = vmax.f32 %v718, 0.0
        %v735 = vmax.f32 %v719, 0.0
        %v736 = vmax.f32 %v720, 0.0
        %v737 = vmax.f32 %v721, 0.0
        %v738 = vmax.f32 %v722, 0.0
        %v739 = vmax.f32 %v723, 0.0
        %v740 = vmax.f32 %v724, 0.0
        %v741 = vmax.f32 %v725, 0.0
        %v742 = vmax.f32 %v726, 0.0
        %v743 = vmax.f32 %v727, 0.0
        %v744 = vmax.f32 %v728, 0.0
        %v745 = vld [vmem:[%s3] sm:$0xf]
        %v746 = vld [vmem:[%s3 + $0x4] sm:$0xf]
        %v747 = vld [vmem:[%s3 + $0x8] sm:$0xf]
        %v748 = vld [vmem:[%s3 + $0xc] sm:$0xf]
        %v749 = vld [vmem:[%s4] sm:$0x1]
        %v750 = vpack.c.bf16 %v730, %v729
        %v751 = vpack.c.bf16 %v732, %v731
        %v752 = vpack.c.bf16 %v734, %v733
        %v753 = vpack.c.bf16 %v736, %v735
        %v754 = vpack.c.bf16 %v738, %v737
        %v755 = vpack.c.bf16 %v740, %v739
        %v756 = vpack.c.bf16 %v742, %v741
        %v757 = vpack.c.bf16 %v744, %v743
        %v759 = vlaneseq
        %v760 = vshrl.u32 %v759, 7
        %v761 = vsub.s32 0, %v760
        %v762 = vrot.slane %v749, %v761
        %v768 = vunpack.c.l.b16 %v745
        %v769 = vunpack.c.l.b16 %v746
        %v770 = vunpack.c.l.b16 %v747
        %v771 = vunpack.c.l.b16 %v748
        %v772 = vpack.c.b16 %v769, %v768
        %v773 = vpack.c.b16 %v771, %v770
        %v777 = vsel %vm599, %v750, 0
        %v780 = vsel %vm599, %v751, 0
        %v783 = vsel %vm599, %v752, 0
        %v786 = vsel %vm599, %v753, 0
        %v789 = vsel %vm599, %v754, 0
        %v792 = vsel %vm599, %v755, 0
        %v795 = vsel %vm599, %v756, 0
        %v798 = vsel %vm599, %v757, 0
        %800 = vmatprep.subr.bf16.mxu0 0
        %801 = vmatpush1.bf16.msra.mxu0 %v772
        %802 = vmatprep.subr.bf16.mxu0 0
        %803 = vmatpush1.bf16.msra.mxu0 %v773
        %804 = vmatprep.subr.bf16.mxu0 0
        %805 = vmatpush1.bf16.msra.mxu0 0
        %806 = vmatprep.subr.bf16.mxu0 0
        %807 = vmatpush1.bf16.msra.mxu0 0
        %808 = vmatprep.subr.bf16.mxu0 0
        %809 = vmatpush1.bf16.msra.mxu0 0
        %810 = vmatprep.subr.bf16.mxu0 0
        %811 = vmatpush1.bf16.msra.mxu0 0
        %812 = vmatprep.subr.bf16.mxu0 0
        %813 = vmatpush1.bf16.msra.mxu0 0
        %814 = vmatprep.subr.bf16.mxu0 0
        %815 = vmatpush1.bf16.msra.mxu0 0
        %816 = vmatprep.subr.bf16.mxu0 0
        %817 = vmatpush1.bf16.msra.mxu0 0
        %818 = vmatprep.subr.bf16.mxu0 0
        %819 = vmatpush1.bf16.msra.mxu0 0
        %820 = vmatprep.subr.bf16.mxu0 0
        %821 = vmatpush1.bf16.msra.mxu0 0
        %822 = vmatprep.subr.bf16.mxu0 0
        %823 = vmatpush1.bf16.msra.mxu0 0
        %824 = vmatprep.subr.bf16.mxu0 0
        %825 = vmatpush1.bf16.msra.mxu0 0
        %826 = vmatprep.subr.bf16.mxu0 0
        %827 = vmatpush1.bf16.msra.mxu0 0
        %828 = vmatprep.subr.bf16.mxu0 0
        %829 = vmatpush1.bf16.msra.mxu0 0
        %830 = vmatprep.subr.bf16.mxu0 0
        %831 = vmatpush1.bf16.msra.mxu0 0
        %832 = vmatprep.mubr.bf16.mxu0 0
        %833 = vmatmul.mubr.bf16.gmra.mrb[0].mxu0 %v777
        %v834 = vpop.f32.mrb[0].mxu0
        %v835 = vadd.f32 %v762, %v834
        %v836 = vpop.f32.mrb[0].mxu0
        %v837 = vpop.f32.mrb[0].mxu0
        %v838 = vadd.f32 %v762, %v837
        %v839 = vpop.f32.mrb[0].mxu0
        %840 = vmatprep.mubr.bf16.mxu0 0
        %841 = vmatmul.mubr.bf16.gmra.mrb[0].mxu0 %v780
        %v842 = vpop.f32.mrb[0].mxu0
        %v843 = vadd.f32 %v762, %v842
        %v844 = vpop.f32.mrb[0].mxu0
        %v845 = vpop.f32.mrb[0].mxu0
        %v846 = vadd.f32 %v762, %v845
        %v847 = vpop.f32.mrb[0].mxu0
        %848 = vmatprep.mubr.bf16.mxu0 0
        %849 = vmatmul.mubr.bf16.gmra.mrb[0].mxu0 %v783
        %v850 = vpop.f32.mrb[0].mxu0
        %v851 = vadd.f32 %v762, %v850
        %v852 = vpop.f32.mrb[0].mxu0
        %v853 = vpop.f32.mrb[0].mxu0
        %v854 = vadd.f32 %v762, %v853
        %v855 = vpop.f32.mrb[0].mxu0
        %856 = vmatprep.mubr.bf16.mxu0 0
        %857 = vmatmul.mubr.bf16.gmra.mrb[0].mxu0 %v786
        %v858 = vpop.f32.mrb[0].mxu0
        %v859 = vadd.f32 %v762, %v858
        %v860 = vpop.f32.mrb[0].mxu0
        %v861 = vpop.f32.mrb[0].mxu0
        %v862 = vadd.f32 %v762, %v861
        %v863 = vpop.f32.mrb[0].mxu0
        %864 = vmatprep.mubr.bf16.mxu0 0
        %865 = vmatmul.mubr.bf16.gmra.mrb[0].mxu0 %v789
        %v866 = vpop.f32.mrb[0].mxu0
        %v867 = vadd.f32 %v762, %v866
        %v868 = vpop.f32.mrb[0].mxu0
        %v869 = vpop.f32.mrb[0].mxu0
        %v870 = vadd.f32 %v762, %v869
        %v871 = vpop.f32.mrb[0].mxu0
        %872 = vmatprep.mubr.bf16.mxu0 0
        %873 = vmatmul.mubr.bf16.gmra.mrb[0].mxu0 %v792
        %v874 = vpop.f32.mrb[0].mxu0
        %v875 = vadd.f32 %v762, %v874
        %v876 = vpop.f32.mrb[0].mxu0
        %v877 = vpop.f32.mrb[0].mxu0
        %v878 = vadd.f32 %v762, %v877
        %v879 = vpop.f32.mrb[0].mxu0
        %880 = vmatprep.mubr.bf16.mxu0 0
        %881 = vmatmul.mubr.bf16.gmra.mrb[0].mxu0 %v795
        %v882 = vpop.f32.mrb[0].mxu0
        %v883 = vadd.f32 %v762, %v882
        %v884 = vpop.f32.mrb[0].mxu0
        %v885 = vpop.f32.mrb[0].mxu0
        %v886 = vadd.f32 %v762, %v885
        %v887 = vpop.f32.mrb[0].mxu0
        %888 = vmatprep.mubr.bf16.mxu0 0
        %889 = vmatmul.mubr.bf16.gmra.mrb[0].mxu0 %v798
        %v890 = vpop.f32.mrb[0].mxu0
        %v891 = vadd.f32 %v762, %v890
        %v892 = vpop.f32.mrb[0].mxu0
        %v893 = vpop.f32.mrb[0].mxu0
        %v894 = vadd.f32 %v762, %v893
        %v895 = vpop.f32.mrb[0].mxu0
        %896 = vdwg.mxu0
        %v897 = vmul.f32 %v835, %v343
        %v898 = vmul.f32 %v838, %v344
        %v899 = vmul.f32 %v843, %v345
        %v900 = vmul.f32 %v846, %v346
        %v901 = vmul.f32 %v851, %v347
        %v902 = vmul.f32 %v854, %v348
        %v903 = vmul.f32 %v859, %v349
        %v904 = vmul.f32 %v862, %v350
        %v905 = vmul.f32 %v867, %v351
        %v906 = vmul.f32 %v870, %v352
        %v907 = vmul.f32 %v875, %v353
        %v908 = vmul.f32 %v878, %v354
        %v909 = vmul.f32 %v883, %v355
        %v910 = vmul.f32 %v886, %v356
        %v911 = vmul.f32 %v891, %v357
        %v912 = vmul.f32 %v894, %v358
        %v913 = vsel %vm599, %v897, 0.0
        %v914 = vsel %vm599, %v898, 0.0
        %v915 = vadd.f32 %v913, %v914
        %v916 = vsel %vm599, %v899, 0.0
        %v917 = vadd.f32 %v915, %v916
        %v918 = vsel %vm599, %v900, 0.0
        %v919 = vadd.f32 %v917, %v918
        %v920 = vsel %vm599, %v901, 0.0
        %v921 = vadd.f32 %v919, %v920
        %v922 = vsel %vm599, %v902, 0.0
        %v923 = vadd.f32 %v921, %v922
        %v924 = vsel %vm599, %v903, 0.0
        %v925 = vadd.f32 %v923, %v924
        %v926 = vsel %vm599, %v904, 0.0
        %v927 = vadd.f32 %v925, %v926
        %v928 = vsel %vm599, %v905, 0.0
        %v929 = vadd.f32 %v927, %v928
        %v930 = vsel %vm599, %v906, 0.0
        %v931 = vadd.f32 %v929, %v930
        %v932 = vsel %vm599, %v907, 0.0
        %v933 = vadd.f32 %v931, %v932
        %v934 = vsel %vm599, %v908, 0.0
        %v935 = vadd.f32 %v933, %v934
        %v936 = vsel %vm599, %v909, 0.0
        %v937 = vadd.f32 %v935, %v936
        %v938 = vsel %vm599, %v910, 0.0
        %v939 = vadd.f32 %v937, %v938
        %v940 = vsel %vm599, %v911, 0.0
        %v941 = vadd.f32 %v939, %v940
        %v942 = vsel %vm599, %v912, 0.0
        %v943 = vadd.f32 %v941, %v942
        %v944 = vrot.slane %v943, 4
        %v945 = vadd.f32 %v943, %v944
        %v946 = vrot.slane %v945, 2
        %v947 = vadd.f32 %v945, %v946
        %v948 = vrot.slane %v947, 1
        %v949 = vadd.f32 %v947, %v948
        %v950 = vmul.f32 %v897, %v897
        %v951 = vmul.f32 %v898, %v898
        %v952 = vmul.f32 %v899, %v899
        %v953 = vmul.f32 %v900, %v900
        %v954 = vmul.f32 %v901, %v901
        %v955 = vmul.f32 %v902, %v902
        %v956 = vmul.f32 %v903, %v903
        %v957 = vmul.f32 %v904, %v904
        %v958 = vmul.f32 %v905, %v905
        %v959 = vmul.f32 %v906, %v906
        %v960 = vmul.f32 %v907, %v907
        %v961 = vmul.f32 %v908, %v908
        %v962 = vmul.f32 %v909, %v909
        %v963 = vmul.f32 %v910, %v910
        %v964 = vmul.f32 %v911, %v911
        %v965 = vmul.f32 %v912, %v912
        %v966 = vsel %vm599, %v950, 0.0
        %v967 = vsel %vm599, %v951, 0.0
        %v968 = vadd.f32 %v966, %v967
        %v969 = vsel %vm599, %v952, 0.0
        %v970 = vadd.f32 %v968, %v969
        %v971 = vsel %vm599, %v953, 0.0
        %v972 = vadd.f32 %v970, %v971
        %v973 = vsel %vm599, %v954, 0.0
        %v974 = vadd.f32 %v972, %v973
        %v975 = vsel %vm599, %v955, 0.0
        %v976 = vadd.f32 %v974, %v975
        %v977 = vsel %vm599, %v956, 0.0
        %v978 = vadd.f32 %v976, %v977
        %v979 = vsel %vm599, %v957, 0.0
        %v980 = vadd.f32 %v978, %v979
        %v981 = vsel %vm599, %v958, 0.0
        %v982 = vadd.f32 %v980, %v981
        %v983 = vsel %vm599, %v959, 0.0
        %v984 = vadd.f32 %v982, %v983
        %v985 = vsel %vm599, %v960, 0.0
        %v986 = vadd.f32 %v984, %v985
        %v987 = vsel %vm599, %v961, 0.0
        %v988 = vadd.f32 %v986, %v987
        %v989 = vsel %vm599, %v962, 0.0
        %v990 = vadd.f32 %v988, %v989
        %v991 = vsel %vm599, %v963, 0.0
        %v992 = vadd.f32 %v990, %v991
        %v993 = vsel %vm599, %v964, 0.0
        %v994 = vadd.f32 %v992, %v993
        %v995 = vsel %vm599, %v965, 0.0
        %v996 = vadd.f32 %v994, %v995
        %v997 = vrot.slane %v996, 4
        %v998 = vadd.f32 %v996, %v997
        %v999 = vrot.slane %v998, 2
        %v1000 = vadd.f32 %v998, %v999
        %v1001 = vrot.slane %v1000, 1
        %v1002 = vadd.f32 %v1000, %v1001
        %v1003 = vmul.f32 %v949, 0.0625
        %v1004 = vmul.f32 %v1002, 0.0625
        %v1005 = vmul.f32 %v1003, %v1003
        %v1006 = vsub.f32 %v1004, %v1005
        %v1007 = vmax.f32 %v1006, 0.0
        %v1008 = vsub.f32 %v835, %v1003
        %v1009 = vsub.f32 %v838, %v1003
        %v1010 = vsub.f32 %v843, %v1003
        %v1011 = vsub.f32 %v846, %v1003
        %v1012 = vsub.f32 %v851, %v1003
        %v1013 = vsub.f32 %v854, %v1003
        %v1014 = vsub.f32 %v859, %v1003
        %v1015 = vsub.f32 %v862, %v1003
        %v1016 = vsub.f32 %v867, %v1003
        %v1017 = vsub.f32 %v870, %v1003
        %v1018 = vsub.f32 %v875, %v1003
        %v1019 = vsub.f32 %v878, %v1003
        %v1020 = vsub.f32 %v883, %v1003
        %v1021 = vsub.f32 %v886, %v1003
        %v1022 = vsub.f32 %v891, %v1003
        %v1023 = vsub.f32 %v894, %v1003
        %v1024 = vadd.f32 %v1007, 1e-05
        %v1025 = vrsqrt.pop %v1024
        %v1026 = vmul.f32 %v1008, %v1025
        %v1027 = vmul.f32 %v1009, %v1025
        %v1028 = vmul.f32 %v1010, %v1025
        %v1029 = vmul.f32 %v1011, %v1025
        %v1030 = vmul.f32 %v1012, %v1025
        %v1031 = vmul.f32 %v1013, %v1025
        %v1032 = vmul.f32 %v1014, %v1025
        %v1033 = vmul.f32 %v1015, %v1025
        %v1034 = vmul.f32 %v1016, %v1025
        %v1035 = vmul.f32 %v1017, %v1025
        %v1036 = vmul.f32 %v1018, %v1025
        %v1037 = vmul.f32 %v1019, %v1025
        %v1038 = vmul.f32 %v1020, %v1025
        %v1039 = vmul.f32 %v1021, %v1025
        %v1040 = vmul.f32 %v1022, %v1025
        %v1041 = vmul.f32 %v1023, %v1025
        %v1042 = vmax.f32 %v1026, 0.0
        %v1043 = vmax.f32 %v1027, 0.0
        %v1044 = vmax.f32 %v1028, 0.0
        %v1045 = vmax.f32 %v1029, 0.0
        %v1046 = vmax.f32 %v1030, 0.0
        %v1047 = vmax.f32 %v1031, 0.0
        %v1048 = vmax.f32 %v1032, 0.0
        %v1049 = vmax.f32 %v1033, 0.0
        %v1050 = vmax.f32 %v1034, 0.0
        %v1051 = vmax.f32 %v1035, 0.0
        %v1052 = vmax.f32 %v1036, 0.0
        %v1053 = vmax.f32 %v1037, 0.0
        %v1054 = vmax.f32 %v1038, 0.0
        %v1055 = vmax.f32 %v1039, 0.0
        %v1056 = vmax.f32 %v1040, 0.0
        %v1057 = vmax.f32 %v1041, 0.0
        %v1058 = vld [vmem:[%s5] sm:$0xf]
        %v1059 = vld [vmem:[%s5 + $0x4] sm:$0xf]
        %v1060 = vld [vmem:[%s5 + $0x8] sm:$0xf]
        %v1061 = vld [vmem:[%s5 + $0xc] sm:$0xf]
        %v1062 = vld [vmem:[%s6] sm:$0x1]
        %v1063 = vpack.c.bf16 %v1043, %v1042
        %v1064 = vpack.c.bf16 %v1045, %v1044
        %v1065 = vpack.c.bf16 %v1047, %v1046
        %v1066 = vpack.c.bf16 %v1049, %v1048
        %v1067 = vpack.c.bf16 %v1051, %v1050
        %v1068 = vpack.c.bf16 %v1053, %v1052
        %v1069 = vpack.c.bf16 %v1055, %v1054
        %v1070 = vpack.c.bf16 %v1057, %v1056
        %v1072 = vlaneseq
        %v1073 = vshrl.u32 %v1072, 7
        %v1074 = vsub.s32 0, %v1073
        %v1075 = vrot.slane %v1062, %v1074
        %v1081 = vunpack.c.l.b16 %v1058
        %v1082 = vunpack.c.l.b16 %v1059
        %v1083 = vunpack.c.l.b16 %v1060
        %v1084 = vunpack.c.l.b16 %v1061
        %v1085 = vpack.c.b16 %v1082, %v1081
        %v1086 = vpack.c.b16 %v1084, %v1083
        %v1090 = vsel %vm599, %v1063, 0
        %v1093 = vsel %vm599, %v1064, 0
        %v1096 = vsel %vm599, %v1065, 0
        %v1099 = vsel %vm599, %v1066, 0
        %v1102 = vsel %vm599, %v1067, 0
        %v1105 = vsel %vm599, %v1068, 0
        %v1108 = vsel %vm599, %v1069, 0
        %v1111 = vsel %vm599, %v1070, 0
        %1113 = vmatprep.subr.bf16.mxu0 0
        %1114 = vmatpush1.bf16.msra.mxu0 %v1085
        %1115 = vmatprep.subr.bf16.mxu0 0
        %1116 = vmatpush1.bf16.msra.mxu0 %v1086
        %1117 = vmatprep.subr.bf16.mxu0 0
        %1118 = vmatpush1.bf16.msra.mxu0 0
        %1119 = vmatprep.subr.bf16.mxu0 0
        %1120 = vmatpush1.bf16.msra.mxu0 0
        %1121 = vmatprep.subr.bf16.mxu0 0
        %1122 = vmatpush1.bf16.msra.mxu0 0
        %1123 = vmatprep.subr.bf16.mxu0 0
        %1124 = vmatpush1.bf16.msra.mxu0 0
        %1125 = vmatprep.subr.bf16.mxu0 0
        %1126 = vmatpush1.bf16.msra.mxu0 0
        %1127 = vmatprep.subr.bf16.mxu0 0
        %1128 = vmatpush1.bf16.msra.mxu0 0
        %1129 = vmatprep.subr.bf16.mxu0 0
        %1130 = vmatpush1.bf16.msra.mxu0 0
        %1131 = vmatprep.subr.bf16.mxu0 0
        %1132 = vmatpush1.bf16.msra.mxu0 0
        %1133 = vmatprep.subr.bf16.mxu0 0
        %1134 = vmatpush1.bf16.msra.mxu0 0
        %1135 = vmatprep.subr.bf16.mxu0 0
        %1136 = vmatpush1.bf16.msra.mxu0 0
        %1137 = vmatprep.subr.bf16.mxu0 0
        %1138 = vmatpush1.bf16.msra.mxu0 0
        %1139 = vmatprep.subr.bf16.mxu0 0
        %1140 = vmatpush1.bf16.msra.mxu0 0
        %1141 = vmatprep.subr.bf16.mxu0 0
        %1142 = vmatpush1.bf16.msra.mxu0 0
        %1143 = vmatprep.subr.bf16.mxu0 0
        %1144 = vmatpush1.bf16.msra.mxu0 0
        %1145 = vmatprep.mubr.bf16.mxu0 0
        %1146 = vmatmul.mubr.bf16.gmra.mrb[0].mxu0 %v1090
        %v1147 = vpop.f32.mrb[0].mxu0
        %v1148 = vadd.f32 %v1075, %v1147
        %v1149 = vpop.f32.mrb[0].mxu0
        %v1150 = vpop.f32.mrb[0].mxu0
        %v1151 = vadd.f32 %v1075, %v1150
        %v1152 = vpop.f32.mrb[0].mxu0
        %1153 = vmatprep.mubr.bf16.mxu0 0
        %1154 = vmatmul.mubr.bf16.gmra.mrb[0].mxu0 %v1093
        %v1155 = vpop.f32.mrb[0].mxu0
        %v1156 = vadd.f32 %v1075, %v1155
        %v1157 = vpop.f32.mrb[0].mxu0
        %v1158 = vpop.f32.mrb[0].mxu0
        %v1159 = vadd.f32 %v1075, %v1158
        %v1160 = vpop.f32.mrb[0].mxu0
        %1161 = vmatprep.mubr.bf16.mxu0 0
        %1162 = vmatmul.mubr.bf16.gmra.mrb[0].mxu0 %v1096
        %v1163 = vpop.f32.mrb[0].mxu0
        %v1164 = vadd.f32 %v1075, %v1163
        %v1165 = vpop.f32.mrb[0].mxu0
        %v1166 = vpop.f32.mrb[0].mxu0
        %v1167 = vadd.f32 %v1075, %v1166
        %v1168 = vpop.f32.mrb[0].mxu0
        %1169 = vmatprep.mubr.bf16.mxu0 0
        %1170 = vmatmul.mubr.bf16.gmra.mrb[0].mxu0 %v1099
        %v1171 = vpop.f32.mrb[0].mxu0
        %v1172 = vadd.f32 %v1075, %v1171
        %v1173 = vpop.f32.mrb[0].mxu0
        %v1174 = vpop.f32.mrb[0].mxu0
        %v1175 = vadd.f32 %v1075, %v1174
        %v1176 = vpop.f32.mrb[0].mxu0
        %1177 = vmatprep.mubr.bf16.mxu0 0
        %1178 = vmatmul.mubr.bf16.gmra.mrb[0].mxu0 %v1102
        %v1179 = vpop.f32.mrb[0].mxu0
        %v1180 = vadd.f32 %v1075, %v1179
        %v1181 = vpop.f32.mrb[0].mxu0
        %v1182 = vpop.f32.mrb[0].mxu0
        %v1183 = vadd.f32 %v1075, %v1182
        %v1184 = vpop.f32.mrb[0].mxu0
        %1185 = vmatprep.mubr.bf16.mxu0 0
        %1186 = vmatmul.mubr.bf16.gmra.mrb[0].mxu0 %v1105
        %v1187 = vpop.f32.mrb[0].mxu0
        %v1188 = vadd.f32 %v1075, %v1187
        %v1189 = vpop.f32.mrb[0].mxu0
        %v1190 = vpop.f32.mrb[0].mxu0
        %v1191 = vadd.f32 %v1075, %v1190
        %v1192 = vpop.f32.mrb[0].mxu0
        %1193 = vmatprep.mubr.bf16.mxu0 0
        %1194 = vmatmul.mubr.bf16.gmra.mrb[0].mxu0 %v1108
        %v1195 = vpop.f32.mrb[0].mxu0
        %v1196 = vadd.f32 %v1075, %v1195
        %v1197 = vpop.f32.mrb[0].mxu0
        %v1198 = vpop.f32.mrb[0].mxu0
        %v1199 = vadd.f32 %v1075, %v1198
        %v1200 = vpop.f32.mrb[0].mxu0
        %1201 = vmatprep.mubr.bf16.mxu0 0
        %1202 = vmatmul.mubr.bf16.gmra.mrb[0].mxu0 %v1111
        %v1203 = vpop.f32.mrb[0].mxu0
        %v1204 = vadd.f32 %v1075, %v1203
        %v1205 = vpop.f32.mrb[0].mxu0
        %v1206 = vpop.f32.mrb[0].mxu0
        %v1207 = vadd.f32 %v1075, %v1206
        %v1208 = vpop.f32.mrb[0].mxu0
        %1209 = vdwg.mxu0
        %1210 = vxpose.xlu0.b32.start [1/16] %v1148, 128
        %1211 = vxpose.xlu0.b32.cont [2/16] %v1151, 128
        %1212 = vxpose.xlu0.b32.cont [3/16] %v1156, 128
        %1213 = vxpose.xlu0.b32.cont [4/16] %v1159, 128
        %1214 = vxpose.xlu0.b32.cont [5/16] %v1164, 128
        %1215 = vxpose.xlu0.b32.cont [6/16] %v1167, 128
        %1216 = vxpose.xlu0.b32.cont [7/16] %v1172, 128
        %1217 = vxpose.xlu0.b32.cont [8/16] %v1175, 128
        %1218 = vxpose.xlu0.b32.cont [9/16] %v1180, 128
        %1219 = vxpose.xlu0.b32.cont [10/16] %v1183, 128
        %1220 = vxpose.xlu0.b32.cont [11/16] %v1188, 128
        %1221 = vxpose.xlu0.b32.cont [12/16] %v1191, 128
        %1222 = vxpose.xlu0.b32.cont [13/16] %v1196, 128
        %1223 = vxpose.xlu0.b32.cont [14/16] %v1199, 128
        %1224 = vxpose.xlu0.b32.cont [15/16] %v1204, 128
        %1225 = vxpose.xlu0.b32.end [16/16] %v1207, 128
        %v1226 = vpop.trf.xlu0
        %v1227 = vpop.trf.xlu0
        %v1228 = vpop.trf.xlu0
        %v1229 = vpop.trf.xlu0
        %v1230 = vpop.trf.xlu0
        %v1231 = vpop.trf.xlu0
        %v1232 = vpop.trf.xlu0
        %v1233 = vpop.trf.xlu0
        %v1234 = vpop.trf.xlu0
        %v1235 = vpop.trf.xlu0
        %v1236 = vpop.trf.xlu0
        %v1237 = vpop.trf.xlu0
        %v1238 = vpop.trf.xlu0
        %v1239 = vpop.trf.xlu0
        %v1240 = vpop.trf.xlu0
        %v1241 = vpop.trf.xlu0
        %1242 = vst [vmem:[%s271] sm:$0xff] %v1226
        %1243 = vst [vmem:[%s271 + $0x8] sm:$0xff] %v1227
        %1244 = vst [vmem:[%s271 + $0x10] sm:$0xff] %v1228
        %1245 = vst [vmem:[%s271 + $0x18] sm:$0xff] %v1229
        %s1246 = sand.u32 %s181, 1
        %s1247 = scalar_lea.sflag [#allocation3], %s1246
        %s1248 = sand.u32 %s181, 1
        %s1249 = smul.addr %s1248, 32
        %s1250 = scalar_lea.vmem [#allocation2], %s1249
        // Predicated region
        $region49: #{tpu_custom_call.1} parent=47 // pred_check
          %p1251 = pneg %p191
        $region50: #{tpu_custom_call.1} parent=47 // pred_check_branch
          %1253 = sbr.rel (%p1251) target = $region52
        $region51: #{tpu_custom_call.1} parent=47 // pred_region
          %s1255 = ssub.s32 512, 512
          %1256 = vsyncadd %s1247, %s1255
          %s1257 = smul.addr %s21, 4
          %s1258 = smul.addr %s1257, 128
          %s1259 = scalar_lea.hbm %s7, %s1258
          %s1260 = sshll.u32 %s1250, 4
          %s1261 = int_to_ptr.vmem [resolvable:$true] %s1260
          %1266 = dma.vmem_to_hbm [thread:$0]  %s1261, 512, %s1259, %s1247, 128, 128, 8
        $region52: #{tpu_custom_call.1} parent=47 // pred_fallthru
          _
      $region48: #{tpu_custom_call.1} parent=5 // pred_fallthru
        _
      %p1267 = scmp.le.s32.totalorder 2, %s16
      // Predicated region
      $region53: #{tpu_custom_call.1} parent=5 // pred_check
        %p1268 = pneg %p1267
      $region54: #{tpu_custom_call.1} parent=5 // pred_check_branch
        %1270 = sbr.rel (%p1268) target = $region56
      $region55: #{tpu_custom_call.1} parent=5 // pred_region
        %s1271 = ssub.s32 %s16, 2
        // Predicated region
        $region57: #{tpu_custom_call.1} parent=55 // pred_check
          %p1272 = pneg %p197
        $region58: #{tpu_custom_call.1} parent=55 // pred_check_branch
          %1274 = sbr.rel (%p1272) target = $region60
        $region59: #{tpu_custom_call.1} parent=55 // pred_region
          %s1275 = sand.u32 %s182, 1
          %s1276 = scalar_lea.sflag [#allocation3], %s1275
          %s1277 = sand.u32 %s182, 1
          %s1278 = smul.addr %s1277, 32
          %s1279 = scalar_lea.vmem [#allocation2], %s1278
          %1280 = dma.done %s1276, 512
        $region60: #{tpu_custom_call.1} parent=55 // pred_fallthru
          _
      $region56: #{tpu_custom_call.1} parent=5 // pred_fallthru
        _
    $region6: #{tpu_custom_call.1} parent=1 // loop_footer
      %s20 = sadd.s32 1, %s16
    $region7: #{tpu_custom_call.1} parent=1 // loop_footer_branch
      %15 = sbr.rel target = $region3
    $region8: #{tpu_custom_call.1} parent=1 // loop_exit
      _
    %1281 = vsyncpa [#allocation3], 1
    %s1282 = scalar_lea.sflag [#allocation3], 1
    %1283 = vsyncpa %s1282, 1

</llo_original>
